<compile_context>
chip_gen: v7x
topology: tpu7x:2x2x1
jax: 0.10.0
libtpu: 0.0.40
codegen_flags: <defaults>
</compile_context>

<pallas_src>
import jax
import jax.numpy as jnp
from jax.experimental import pallas as pl
from jax.experimental.pallas import tpu as pltpu

IN_FEATURES = 16
OUT_FEATURES = 32

PACK = 4                          # batch rows packed per lane-dense super-row
PACKED_IN = IN_FEATURES * PACK    # 64
PACKED_OUT = OUT_FEATURES * PACK  # 128 -> unmasked 128-lane stores
TILE_ROWS_PACKED = 2048           # packed rows per grid step (= 8192 batch rows)
TILE_ROWS_UNPACKED = 8192         # fallback tile (B % 4 != 0)


def linear_add_kernel(x_ref, w_ref, b_ref, x2_ref, o_ref):
    # x: [rows, K], w: [K, N] (pre-transposed / block-diagonal in the wrapper),
    # b: [1, N], x2: [rows, N].
    y = jnp.dot(
        x_ref[...],
        w_ref[...],
        preferred_element_type=jnp.float32,
        precision=jax.lax.Precision.HIGHEST,
    )
    o_ref[...] = (y + b_ref[...] + x2_ref[...]).astype(o_ref.dtype)


def _run_gridless(x1, w, b, x2):
    # Small batch: single VMEM-resident block, no grid -> no pipeline machinery.
    rows, n = x2.shape
    vmem = pl.BlockSpec(memory_space=pltpu.MemorySpace.VMEM)
    return pl.pallas_call(
        linear_add_kernel,
        out_shape=jax.ShapeDtypeStruct((rows, n), jnp.float32),
        in_specs=[vmem, vmem, vmem, vmem],
        out_specs=vmem,
    )(x1, w, b, x2)


def _run_tiled(x1, w, b, x2, tile_rows):
    # Stream (tile_rows, .) tiles of x1/x2/out; weight & bias stay VMEM-resident
    # (index_map always returns block (0, 0)).  Ragged last block is masked by
    # Pallas (no jnp.pad -> no extra HBM traffic).
    rows, k = x1.shape
    n = x2.shape[1]
    grid = (pl.cdiv(rows, tile_rows),)
    return pl.pallas_call(
        linear_add_kernel,
        out_shape=jax.ShapeDtypeStruct((rows, n), jnp.float32),
        grid=grid,
        in_specs=[
            pl.BlockSpec((tile_rows, k), lambda i: (i, 0)),
            pl.BlockSpec((k, n), lambda i: (0, 0)),
            pl.BlockSpec((1, n), lambda i: (0, 0)),
            pl.BlockSpec((tile_rows, n), lambda i: (i, 0)),
        ],
        out_specs=pl.BlockSpec((tile_rows, n), lambda i: (i, 0)),
        compiler_params=pltpu.CompilerParams(
            dimension_semantics=("parallel",)),
    )(x1, w, b, x2)


def linear_add(x1, w, b, x2):
    """Model.forward: linear1(x1) + x2.

    x1: [B, 16], w: [32, 16] (PyTorch nn.Linear layout), b: [32] or [1, 32],
    x2: [B, 32]. Returns [B, 32] float32.
    """
    x1 = jnp.asarray(x1, jnp.float32)
    x2 = jnp.asarray(x2, jnp.float32)
    wt = jnp.asarray(w, jnp.float32).T                       # [16, 32]
    b2 = jnp.asarray(b, jnp.float32).reshape(1, OUT_FEATURES)
    B = x1.shape[0]

    if B % PACK == 0 and B >= PACK:
        # Lane-dense packed path: 4 batch rows -> one 64-wide input row /
        # 128-wide output row.  Block-diagonal weight makes each packed row 4
        # independent 16->32 matvecs.
        rows = B // PACK
        x1p = x1.reshape(rows, PACKED_IN)
        x2p = x2.reshape(rows, PACKED_OUT)
        wp = jnp.kron(jnp.eye(PACK, dtype=jnp.float32), wt)  # [64, 128]
        bp = jnp.tile(b2, (1, PACK))                         # [1, 128]
        if rows <= TILE_ROWS_PACKED:
            outp = _run_gridless(x1p, wp, bp, x2p)
        else:
            outp = _run_tiled(x1p, wp, bp, x2p, TILE_ROWS_PACKED)
        return outp.reshape(B, OUT_FEATURES)

    # Ragged / tiny-batch fallback: unpacked layout (stores lane-masked).
    if B <= TILE_ROWS_UNPACKED:
        return _run_gridless(x1, wt, b2, x2)
    return _run_tiled(x1, wt, b2, x2, TILE_ROWS_UNPACKED)


if __name__ == "__main__":
    key = jax.random.PRNGKey(0)
    k_w, k_b, k1, k2, k3, k4, k5, k6 = jax.random.split(key, 8)

    # Parameters matching nn.Linear's uniform(-1/sqrt(in), 1/sqrt(in)).
    bound = 1.0 / (IN_FEATURES ** 0.5)
    w = jax.random.uniform(k_w, (OUT_FEATURES, IN_FEATURES),
                           minval=-bound, maxval=bound, dtype=jnp.float32)
    b = jax.random.uniform(k_b, (OUT_FEATURES,),
                           minval=-bound, maxval=bound, dtype=jnp.float32)

    def reference(x1, x2):
        return (jnp.dot(x1, w.T, precision=jax.lax.Precision.HIGHEST)
                + b[None, :] + x2)

    def check(x1, x2):
        out = jax.block_until_ready(linear_add(x1, w, b, x2))
        ref = reference(x1, x2)
        assert out.shape == ref.shape
        err = float(jnp.max(jnp.abs(out - ref)))
        assert jnp.allclose(out, ref, atol=1e-4, rtol=1e-4), err

    # 1) Spec shape (1, 16): gridless unpacked path.
    check(jax.random.normal(k1, (1, IN_FEATURES), dtype=jnp.float32),
          jax.random.normal(k2, (1, OUT_FEATURES), dtype=jnp.float32))

    # 2) Packed gridless path (B % 4 == 0, fits one VMEM block).
    check(jax.random.normal(k3, (256, IN_FEATURES), dtype=jnp.float32),
          jax.random.normal(k4, (256, OUT_FEATURES), dtype=jnp.float32))

    # 3) Packed tiled path: >= 2 parallel grid steps (uses both TCs on v7x);
    #    the second size also exercises the ragged (masked) trailing block.
    for B_big in (16384, 9216):
        check(jax.random.normal(k5, (B_big, IN_FEATURES), dtype=jnp.float32),
              jax.random.normal(k6, (B_big, OUT_FEATURES), dtype=jnp.float32))

    # 4) Ragged non-multiple-of-4 batch: unpacked tiled fallback with a
    #    1-row masked trailing block.
    B_rag = TILE_ROWS_UNPACKED + 1
    check(jax.random.normal(k5, (B_rag, IN_FEATURES), dtype=jnp.float32),
          jax.random.normal(k6, (B_rag, OUT_FEATURES), dtype=jnp.float32))

    print("KERNEL_OK")
</pallas_src>

<mosaic_0001>
module attributes {stable_mosaic.version = 11 : i64} {
  func.func @linear_add_kernel(%arg0: memref<1x16xf32, #tpu.memory_space<vmem>>, %arg1: memref<16x32xf32, #tpu.memory_space<vmem>>, %arg2: memref<1x32xf32, #tpu.memory_space<vmem>>, %arg3: memref<1x32xf32, #tpu.memory_space<vmem>>, %arg4: memref<1x32xf32, #tpu.memory_space<vmem>>) attributes {dimension_semantics = [], scalar_prefetch = 0 : i64, scratch_operands = 0 : i64, tpu.core_type = #tpu.core_type<tc>} {
    %c0 = arith.constant 0 : index
    %c0_0 = arith.constant 0 : index
    %0 = vector.load %arg0[%c0, %c0_0] : memref<1x16xf32, #tpu.memory_space<vmem>>, vector<1x16xf32>
    %c0_1 = arith.constant 0 : index
    %c0_2 = arith.constant 0 : index
    %1 = vector.load %arg1[%c0_1, %c0_2] : memref<16x32xf32, #tpu.memory_space<vmem>>, vector<16x32xf32>
    %cst = arith.constant dense<0.000000e+00> : vector<1x32xf32>
    %2 = tpu.matmul %0, %1, %cst {dimension_numbers = #tpu.dot_dimension_numbers<[1], [0], [0], [1], [0, 0, 1, 1], [], []>, precision = #tpu.contract_precision<fp32>} : vector<1x16xf32>, vector<16x32xf32>, vector<1x32xf32> -> vector<1x32xf32>
    %c0_3 = arith.constant 0 : index
    %c0_4 = arith.constant 0 : index
    %3 = vector.load %arg2[%c0_3, %c0_4] : memref<1x32xf32, #tpu.memory_space<vmem>>, vector<1x32xf32>
    %4 = arith.addf %2, %3 : vector<1x32xf32>
    %c0_5 = arith.constant 0 : index
    %c0_6 = arith.constant 0 : index
    %5 = vector.load %arg3[%c0_5, %c0_6] : memref<1x32xf32, #tpu.memory_space<vmem>>, vector<1x32xf32>
    %6 = arith.addf %4, %5 : vector<1x32xf32>
    %c0_7 = arith.constant 0 : index
    %c0_8 = arith.constant 0 : index
    %7 = vector.load %arg4[%c0_7, %c0_8] : memref<1x32xf32, #tpu.memory_space<vmem>>, vector<1x32xf32>
    tpu.vector_store %arg4[%c0_7, %c0_8], %6 {strides = array<i32>} : memref<1x32xf32, #tpu.memory_space<vmem>>, vector<1x32xf32>,
    return
  }
}

</mosaic_0001>

<llo_original>
// kernel: tpu_custom_call.1
$region0: #{tpu_custom_call.1}
  #allocation0 [shape = 'u32[]', space=smem, size = 0x4, offset = 0x4, fixed_abs, tag = 'smem constant byte address 0x4 - core index']
  #allocation1 [shape = 'u32[144,128]{1,0:T(1,128)}', space=vmem, size = 0x12000, scoped, tag = 'internal scratch']
  %s0 = inlined_call_operand.hbm [shape: f32[1,16], index: 0, kind: input, shape index: {}]
  %s1 = inlined_call_operand.hbm [shape: f32[16,32], index: 1, kind: input, shape index: {}]
  %s2 = inlined_call_operand.vmem [shape: f32[1,32], index: 2, kind: input, shape index: {}]
  %s3 = inlined_call_operand.vmem [shape: f32[1,32], index: 3, kind: input, shape index: {}]
  %s4 = inlined_call_operand.hbm [shape: f32[1,32], index: 4, kind: output, shape index: {}]
  %s5 = sld [smem:[#allocation0]]
  $region34: #{tpu_custom_call.1} parent=0
    _
  %s7 = ssub.s32 1, %s5
  %s8 = scalar_select 0, %s7, %s5
  $region1: #{tpu_custom_call.1} parent=0
    #allocation2 [shape = 'u8[512]{0}', space=vmem, size = 0x400, scoped, tag = 'input window, operand 0, single buffered']
    #allocation3 [shape = 's32[1]{0}', space=sflag, size = 0x4, scoped, tag = 'scoped memory for tpu_custom_call.1']
    #allocation4 [shape = 's32[1]{0}', space=sflag, size = 0x4, scoped, tag = 'scoped memory for tpu_custom_call.1']
    #allocation5 [shape = 'u8[8192]{0}', space=vmem, size = 0x2000, scoped, tag = 'input window, operand 1, single buffered']
    #allocation6 [shape = 's32[1]{0}', space=sflag, size = 0x4, scoped, tag = 'scoped memory for tpu_custom_call.1']
    #allocation7 [shape = 'u8[512]{0}', space=vmem, size = 0x400, scoped, tag = 'output window, operand 0, single buffered']
    %9 = vsyncpa [#allocation3], 0
    %10 = vsyncpa [#allocation6], 0
    %11 = vsyncpa [#allocation4], 0
    // Predicated region
    $region2: #{tpu_custom_call.1} parent=1 // pred_check
      _
    $region3: #{tpu_custom_call.1} parent=1 // pred_check_branch
      %13 = sbr.rel (0) target = $region5
    $region4: #{tpu_custom_call.1} parent=1 // pred_region
      %s15 = ssub.s32 16, 16
      %16 = vsyncadd [#allocation3], %s15
      %s18 = sshll.u32 [#allocation2], 4
      %s19 = int_to_ptr.vmem [resolvable:$true] %s18
      %21 = dma.hbm_to_vmem [thread:$0]  %s0, 16, %s19, [#allocation3]
    $region5: #{tpu_custom_call.1} parent=1 // pred_fallthru
      _
    // Predicated region
    $region6: #{tpu_custom_call.1} parent=1 // pred_check
      _
    $region7: #{tpu_custom_call.1} parent=1 // pred_check_branch
      %23 = sbr.rel (0) target = $region9
    $region8: #{tpu_custom_call.1} parent=1 // pred_region
      %s25 = ssub.s32 256, 256
      %26 = vsyncadd [#allocation6], %s25
      %s27 = sshll.u32 [#allocation5], 4
      %s28 = int_to_ptr.vmem [resolvable:$true] %s27
      %33 = dma.hbm_to_vmem [thread:$0]  %s1, 256, %s28, [#allocation6], 128, 128, 8
    $region9: #{tpu_custom_call.1} parent=1 // pred_fallthru
      _
    // Predicated region
    $region10: #{tpu_custom_call.1} parent=1 // pred_check
      _
    $region11: #{tpu_custom_call.1} parent=1 // pred_check_branch
      %35 = sbr.rel (0) target = $region13
    $region12: #{tpu_custom_call.1} parent=1 // pred_region
      _
    $region13: #{tpu_custom_call.1} parent=1 // pred_fallthru
      _
    // Predicated region
    $region14: #{tpu_custom_call.1} parent=1 // pred_check
      _
    $region15: #{tpu_custom_call.1} parent=1 // pred_check_branch
      %37 = sbr.rel (0) target = $region17
    $region16: #{tpu_custom_call.1} parent=1 // pred_region
      _
    $region17: #{tpu_custom_call.1} parent=1 // pred_fallthru
      _
    // Predicated region
    $region18: #{tpu_custom_call.1} parent=1 // pred_check
      _
    $region19: #{tpu_custom_call.1} parent=1 // pred_check_branch
      %39 = sbr.rel (0) target = $region21
    $region20: #{tpu_custom_call.1} parent=1 // pred_region
      %40 = dma.done [#allocation3], 16
    $region21: #{tpu_custom_call.1} parent=1 // pred_fallthru
      _
    // Predicated region
    $region22: #{tpu_custom_call.1} parent=1 // pred_check
      _
    $region23: #{tpu_custom_call.1} parent=1 // pred_check_branch
      %42 = sbr.rel (0) target = $region25
    $region24: #{tpu_custom_call.1} parent=1 // pred_region
      %43 = dma.done [#allocation6], 256
    $region25: #{tpu_custom_call.1} parent=1 // pred_fallthru
      _
    %v44 = vld [vmem:[#allocation2] sm:$0x1]
    %v45 = vld [vmem:[#allocation5] sm:$0xff]
    %v46 = vld [vmem:[#allocation5 + $0x8] sm:$0xff]
    %v47 = vld [vmem:[%s2] sm:$0x1]
    %vm48 = vcmask 130048
    %v50 = vsel %vm48, %v44, 0
    %52 = vmatprep.subr.mxu0 0.0
    %v53 = vand.u32 %v45, 4294901760
    %54 = vmatpush1.msra.mxu0 %v53
    %55 = vmatprep.subr.mxu0 0.0
    %v56 = vand.u32 %v46, 4294901760
    %57 = vmatpush1.msra.mxu0 %v56
    %58 = vmatprep.subr.mxu0 0.0
    %59 = vmatpush1.msra.mxu0 0.0
    %60 = vmatprep.subr.mxu0 0.0
    %61 = vmatpush1.msra.mxu0 0.0
    %62 = vmatprep.subr.mxu0 0.0
    %63 = vmatpush1.msra.mxu0 0.0
    %64 = vmatprep.subr.mxu0 0.0
    %65 = vmatpush1.msra.mxu0 0.0
    %66 = vmatprep.subr.mxu0 0.0
    %67 = vmatpush1.msra.mxu0 0.0
    %68 = vmatprep.subr.mxu0 0.0
    %69 = vmatpush1.msra.mxu0 0.0
    %70 = vmatprep.subr.mxu0 0.0
    %71 = vmatpush1.msra.mxu0 0.0
    %72 = vmatprep.subr.mxu0 0.0
    %73 = vmatpush1.msra.mxu0 0.0
    %74 = vmatprep.subr.mxu0 0.0
    %75 = vmatpush1.msra.mxu0 0.0
    %76 = vmatprep.subr.mxu0 0.0
    %77 = vmatpush1.msra.mxu0 0.0
    %78 = vmatprep.subr.mxu0 0.0
    %79 = vmatpush1.msra.mxu0 0.0
    %80 = vmatprep.subr.mxu0 0.0
    %81 = vmatpush1.msra.mxu0 0.0
    %82 = vmatprep.subr.mxu0 0.0
    %83 = vmatpush1.msra.mxu0 0.0
    %84 = vmatprep.subr.mxu0 0.0
    %85 = vmatpush1.msra.mxu0 0.0
    %86 = vmatprep.subr.mxu0 0.0
    %87 = vmatpush1.msra.mxu0 0.0
    %88 = vmatprep.subr.mxu0 0.0
    %89 = vmatpush1.msra.mxu0 0.0
    %90 = vmatprep.subr.mxu0 0.0
    %91 = vmatpush1.msra.mxu0 0.0
    %92 = vmatprep.subr.mxu0 0.0
    %93 = vmatpush1.msra.mxu0 0.0
    %94 = vmatprep.subr.mxu0 0.0
    %95 = vmatpush1.msra.mxu0 0.0
    %96 = vmatprep.subr.mxu0 0.0
    %97 = vmatpush1.msra.mxu0 0.0
    %98 = vmatprep.subr.mxu0 0.0
    %99 = vmatpush1.msra.mxu0 0.0
    %100 = vmatprep.subr.mxu0 0.0
    %101 = vmatpush1.msra.mxu0 0.0
    %102 = vmatprep.subr.mxu0 0.0
    %103 = vmatpush1.msra.mxu0 0.0
    %104 = vmatprep.subr.mxu0 0.0
    %105 = vmatpush1.msra.mxu0 0.0
    %106 = vmatprep.subr.mxu0 0.0
    %107 = vmatpush1.msra.mxu0 0.0
    %108 = vmatprep.subr.mxu0 0.0
    %109 = vmatpush1.msra.mxu0 0.0
    %110 = vmatprep.subr.mxu0 0.0
    %111 = vmatpush1.msra.mxu0 0.0
    %112 = vmatprep.subr.mxu0 0.0
    %113 = vmatpush1.msra.mxu0 0.0
    %114 = vmatprep.subr.mxu0 0.0
    %115 = vmatpush1.msra.mxu0 0.0
    %116 = vmatprep.subr.mxu0 0.0
    %117 = vmatpush1.msra.mxu0 0.0
    %118 = vmatprep.mubr.f32.mxu0 0.0
    %v119 = vand.u32 %v50, 4294901760
    %v120 = vsub.f32 %v50, %v119
    %v121 = vand.u32 %v120, 4294901760
    %v122 = vsub.f32 %v120, %v121
    %v123 = vand.u32 %v122, 4294901760
    %124 = vmatmul.mubr.f32.gmra.mrb[0].mxu0 %v123
    %v125 = vpop.f32.mrb[0].mxu0
    %v126 = vadd.f32 %v47, %v125
    %v127 = vpop.f32.mrb[0].mxu0
    %128 = vdwg.mxu0
    %129 = vmatprep.subr.mxu0 0.0
    %v130 = vand.u32 %v45, 4294901760
    %v131 = vsub.f32 %v45, %v130
    %v132 = vand.u32 %v131, 4294901760
    %v133 = vsub.f32 %v131, %v132
    %v134 = vand.u32 %v133, 4294901760
    %135 = vmatpush1.msra.mxu0 %v134
    %136 = vmatprep.subr.mxu0 0.0
    %v137 = vand.u32 %v46, 4294901760
    %v138 = vsub.f32 %v46, %v137
    %v139 = vand.u32 %v138, 4294901760
    %v140 = vsub.f32 %v138, %v139
    %v141 = vand.u32 %v140, 4294901760
    %142 = vmatpush1.msra.mxu0 %v141
    %143 = vmatprep.subr.mxu0 0.0
    %144 = vmatpush1.msra.mxu0 0.0
    %145 = vmatprep.subr.mxu0 0.0
    %146 = vmatpush1.msra.mxu0 0.0
    %147 = vmatprep.subr.mxu0 0.0
    %148 = vmatpush1.msra.mxu0 0.0
    %149 = vmatprep.subr.mxu0 0.0
    %150 = vmatpush1.msra.mxu0 0.0
    %151 = vmatprep.subr.mxu0 0.0
    %152 = vmatpush1.msra.mxu0 0.0
    %153 = vmatprep.subr.mxu0 0.0
    %154 = vmatpush1.msra.mxu0 0.0
    %155 = vmatprep.subr.mxu0 0.0
    %156 = vmatpush1.msra.mxu0 0.0
    %157 = vmatprep.subr.mxu0 0.0
    %158 = vmatpush1.msra.mxu0 0.0
    %159 = vmatprep.subr.mxu0 0.0
    %160 = vmatpush1.msra.mxu0 0.0
    %161 = vmatprep.subr.mxu0 0.0
    %162 = vmatpush1.msra.mxu0 0.0
    %163 = vmatprep.subr.mxu0 0.0
    %164 = vmatpush1.msra.mxu0 0.0
    %165 = vmatprep.subr.mxu0 0.0
    %166 = vmatpush1.msra.mxu0 0.0
    %167 = vmatprep.subr.mxu0 0.0
    %168 = vmatpush1.msra.mxu0 0.0
    %169 = vmatprep.subr.mxu0 0.0
    %170 = vmatpush1.msra.mxu0 0.0
    %171 = vmatprep.subr.mxu0 0.0
    %172 = vmatpush1.msra.mxu0 0.0
    %173 = vmatprep.subr.mxu0 0.0
    %174 = vmatpush1.msra.mxu0 0.0
    %175 = vmatprep.subr.mxu0 0.0
    %176 = vmatpush1.msra.mxu0 0.0
    %177 = vmatprep.subr.mxu0 0.0
    %178 = vmatpush1.msra.mxu0 0.0
    %179 = vmatprep.subr.mxu0 0.0
    %180 = vmatpush1.msra.mxu0 0.0
    %181 = vmatprep.subr.mxu0 0.0
    %182 = vmatpush1.msra.mxu0 0.0
    %183 = vmatprep.subr.mxu0 0.0
    %184 = vmatpush1.msra.mxu0 0.0
    %185 = vmatprep.subr.mxu0 0.0
    %186 = vmatpush1.msra.mxu0 0.0
    %187 = vmatprep.subr.mxu0 0.0
    %188 = vmatpush1.msra.mxu0 0.0
    %189 = vmatprep.subr.mxu0 0.0
    %190 = vmatpush1.msra.mxu0 0.0
    %191 = vmatprep.subr.mxu0 0.0
    %192 = vmatpush1.msra.mxu0 0.0
    %193 = vmatprep.subr.mxu0 0.0
    %194 = vmatpush1.msra.mxu0 0.0
    %195 = vmatprep.subr.mxu0 0.0
    %196 = vmatpush1.msra.mxu0 0.0
    %197 = vmatprep.subr.mxu0 0.0
    %198 = vmatpush1.msra.mxu0 0.0
    %199 = vmatprep.subr.mxu0 0.0
    %200 = vmatpush1.msra.mxu0 0.0
    %201 = vmatprep.subr.mxu0 0.0
    %202 = vmatpush1.msra.mxu0 0.0
    %203 = vmatprep.mubr.f32.mxu0 0.0
    %v204 = vand.u32 %v50, 4294901760
    %205 = vmatmul.mubr.f32.gmra.mrb[0].mxu0 %v204
    %v206 = vpop.f32.mrb[0].mxu0
    %v207 = vadd.f32 %v126, %v206
    %v208 = vpop.f32.mrb[0].mxu0
    %209 = vdwg.mxu0
    %210 = vmatprep.subr.mxu0 0.0
    %v211 = vand.u32 %v45, 4294901760
    %v212 = vsub.f32 %v45, %v211
    %213 = vmatpush1.msra.mxu0 %v212
    %214 = vmatprep.subr.mxu0 0.0
    %v215 = vand.u32 %v46, 4294901760
    %v216 = vsub.f32 %v46, %v215
    %217 = vmatpush1.msra.mxu0 %v216
    %218 = vmatprep.subr.mxu0 0.0
    %219 = vmatpush1.msra.mxu0 0.0
    %220 = vmatprep.subr.mxu0 0.0
    %221 = vmatpush1.msra.mxu0 0.0
    %222 = vmatprep.subr.mxu0 0.0
    %223 = vmatpush1.msra.mxu0 0.0
    %224 = vmatprep.subr.mxu0 0.0
    %225 = vmatpush1.msra.mxu0 0.0
    %226 = vmatprep.subr.mxu0 0.0
    %227 = vmatpush1.msra.mxu0 0.0
    %228 = vmatprep.subr.mxu0 0.0
    %229 = vmatpush1.msra.mxu0 0.0
    %230 = vmatprep.subr.mxu0 0.0
    %231 = vmatpush1.msra.mxu0 0.0
    %232 = vmatprep.subr.mxu0 0.0
    %233 = vmatpush1.msra.mxu0 0.0
    %234 = vmatprep.subr.mxu0 0.0
    %235 = vmatpush1.msra.mxu0 0.0
    %236 = vmatprep.subr.mxu0 0.0
    %237 = vmatpush1.msra.mxu0 0.0
    %238 = vmatprep.subr.mxu0 0.0
    %239 = vmatpush1.msra.mxu0 0.0
    %240 = vmatprep.subr.mxu0 0.0
    %241 = vmatpush1.msra.mxu0 0.0
    %242 = vmatprep.subr.mxu0 0.0
    %243 = vmatpush1.msra.mxu0 0.0
    %244 = vmatprep.subr.mxu0 0.0
    %245 = vmatpush1.msra.mxu0 0.0
    %246 = vmatprep.subr.mxu0 0.0
    %247 = vmatpush1.msra.mxu0 0.0
    %248 = vmatprep.subr.mxu0 0.0
    %249 = vmatpush1.msra.mxu0 0.0
    %250 = vmatprep.subr.mxu0 0.0
    %251 = vmatpush1.msra.mxu0 0.0
    %252 = vmatprep.subr.mxu0 0.0
    %253 = vmatpush1.msra.mxu0 0.0
    %254 = vmatprep.subr.mxu0 0.0
    %255 = vmatpush1.msra.mxu0 0.0
    %256 = vmatprep.subr.mxu0 0.0
    %257 = vmatpush1.msra.mxu0 0.0
    %258 = vmatprep.subr.mxu0 0.0
    %259 = vmatpush1.msra.mxu0 0.0
    %260 = vmatprep.subr.mxu0 0.0
    %261 = vmatpush1.msra.mxu0 0.0
    %262 = vmatprep.subr.mxu0 0.0
    %263 = vmatpush1.msra.mxu0 0.0
    %264 = vmatprep.subr.mxu0 0.0
    %265 = vmatpush1.msra.mxu0 0.0
    %266 = vmatprep.subr.mxu0 0.0
    %267 = vmatpush1.msra.mxu0 0.0
    %268 = vmatprep.subr.mxu0 0.0
    %269 = vmatpush1.msra.mxu0 0.0
    %270 = vmatprep.subr.mxu0 0.0
    %271 = vmatpush1.msra.mxu0 0.0
    %272 = vmatprep.subr.mxu0 0.0
    %273 = vmatpush1.msra.mxu0 0.0
    %274 = vmatprep.subr.mxu0 0.0
    %275 = vmatpush1.msra.mxu0 0.0
    %276 = vmatprep.subr.mxu0 0.0
    %277 = vmatpush1.msra.mxu0 0.0
    %278 = vmatprep.mubr.f32.mxu0 0.0
    %v279 = vand.u32 %v50, 4294901760
    %v280 = vsub.f32 %v50, %v279
    %281 = vmatmul.mubr.f32.gmra.mrb[0].mxu0 %v280
    %v282 = vpop.f32.mrb[0].mxu0
    %v283 = vadd.f32 %v207, %v282
    %v284 = vpop.f32.mrb[0].mxu0
    %285 = vdwg.mxu0
    %286 = vmatprep.subr.mxu0 0.0
    %v287 = vand.u32 %v45, 4294901760
    %288 = vmatpush1.msra.mxu0 %v287
    %289 = vmatprep.subr.mxu0 0.0
    %v290 = vand.u32 %v46, 4294901760
    %291 = vmatpush1.msra.mxu0 %v290
    %292 = vmatprep.subr.mxu0 0.0
    %293 = vmatpush1.msra.mxu0 0.0
    %294 = vmatprep.subr.mxu0 0.0
    %295 = vmatpush1.msra.mxu0 0.0
    %296 = vmatprep.subr.mxu0 0.0
    %297 = vmatpush1.msra.mxu0 0.0
    %298 = vmatprep.subr.mxu0 0.0
    %299 = vmatpush1.msra.mxu0 0.0
    %300 = vmatprep.subr.mxu0 0.0
    %301 = vmatpush1.msra.mxu0 0.0
    %302 = vmatprep.subr.mxu0 0.0
    %303 = vmatpush1.msra.mxu0 0.0
    %304 = vmatprep.subr.mxu0 0.0
    %305 = vmatpush1.msra.mxu0 0.0
    %306 = vmatprep.subr.mxu0 0.0
    %307 = vmatpush1.msra.mxu0 0.0
    %308 = vmatprep.subr.mxu0 0.0
    %309 = vmatpush1.msra.mxu0 0.0
    %310 = vmatprep.subr.mxu0 0.0
    %311 = vmatpush1.msra.mxu0 0.0
    %312 = vmatprep.subr.mxu0 0.0
    %313 = vmatpush1.msra.mxu0 0.0
    %314 = vmatprep.subr.mxu0 0.0
    %315 = vmatpush1.msra.mxu0 0.0
    %316 = vmatprep.subr.mxu0 0.0
    %317 = vmatpush1.msra.mxu0 0.0
    %318 = vmatprep.subr.mxu0 0.0
    %319 = vmatpush1.msra.mxu0 0.0
    %320 = vmatprep.subr.mxu0 0.0
    %321 = vmatpush1.msra.mxu0 0.0
    %322 = vmatprep.subr.mxu0 0.0
    %323 = vmatpush1.msra.mxu0 0.0
    %324 = vmatprep.subr.mxu0 0.0
    %325 = vmatpush1.msra.mxu0 0.0
    %326 = vmatprep.subr.mxu0 0.0
    %327 = vmatpush1.msra.mxu0 0.0
    %328 = vmatprep.subr.mxu0 0.0
    %329 = vmatpush1.msra.mxu0 0.0
    %330 = vmatprep.subr.mxu0 0.0
    %331 = vmatpush1.msra.mxu0 0.0
    %332 = vmatprep.subr.mxu0 0.0
    %333 = vmatpush1.msra.mxu0 0.0
    %334 = vmatprep.subr.mxu0 0.0
    %335 = vmatpush1.msra.mxu0 0.0
    %336 = vmatprep.subr.mxu0 0.0
    %337 = vmatpush1.msra.mxu0 0.0
    %338 = vmatprep.subr.mxu0 0.0
    %339 = vmatpush1.msra.mxu0 0.0
    %340 = vmatprep.subr.mxu0 0.0
    %341 = vmatpush1.msra.mxu0 0.0
    %342 = vmatprep.subr.mxu0 0.0
    %343 = vmatpush1.msra.mxu0 0.0
    %344 = vmatprep.subr.mxu0 0.0
    %345 = vmatpush1.msra.mxu0 0.0
    %346 = vmatprep.subr.mxu0 0.0
    %347 = vmatpush1.msra.mxu0 0.0
    %348 = vmatprep.subr.mxu0 0.0
    %349 = vmatpush1.msra.mxu0 0.0
    %350 = vmatprep.subr.mxu0 0.0
    %351 = vmatpush1.msra.mxu0 0.0
    %352 = vmatprep.mubr.f32.mxu0 0.0
    %v353 = vand.u32 %v50, 4294901760
    %v354 = vsub.f32 %v50, %v353
    %v355 = vand.u32 %v354, 4294901760
    %356 = vmatmul.mubr.f32.gmra.mrb[0].mxu0 %v355
    %v357 = vpop.f32.mrb[0].mxu0
    %v358 = vadd.f32 %v283, %v357
    %v359 = vpop.f32.mrb[0].mxu0
    %360 = vdwg.mxu0
    %361 = vmatprep.subr.mxu0 0.0
    %v362 = vand.u32 %v45, 4294901760
    %v363 = vsub.f32 %v45, %v362
    %v364 = vand.u32 %v363, 4294901760
    %365 = vmatpush1.msra.mxu0 %v364
    %366 = vmatprep.subr.mxu0 0.0
    %v367 = vand.u32 %v46, 4294901760
    %v368 = vsub.f32 %v46, %v367
    %v369 = vand.u32 %v368, 4294901760
    %370 = vmatpush1.msra.mxu0 %v369
    %371 = vmatprep.subr.mxu0 0.0
    %372 = vmatpush1.msra.mxu0 0.0
    %373 = vmatprep.subr.mxu0 0.0
    %374 = vmatpush1.msra.mxu0 0.0
    %375 = vmatprep.subr.mxu0 0.0
    %376 = vmatpush1.msra.mxu0 0.0
    %377 = vmatprep.subr.mxu0 0.0
    %378 = vmatpush1.msra.mxu0 0.0
    %379 = vmatprep.subr.mxu0 0.0
    %380 = vmatpush1.msra.mxu0 0.0
    %381 = vmatprep.subr.mxu0 0.0
    %382 = vmatpush1.msra.mxu0 0.0
    %383 = vmatprep.subr.mxu0 0.0
    %384 = vmatpush1.msra.mxu0 0.0
    %385 = vmatprep.subr.mxu0 0.0
    %386 = vmatpush1.msra.mxu0 0.0
    %387 = vmatprep.subr.mxu0 0.0
    %388 = vmatpush1.msra.mxu0 0.0
    %389 = vmatprep.subr.mxu0 0.0
    %390 = vmatpush1.msra.mxu0 0.0
    %391 = vmatprep.subr.mxu0 0.0
    %392 = vmatpush1.msra.mxu0 0.0
    %393 = vmatprep.subr.mxu0 0.0
    %394 = vmatpush1.msra.mxu0 0.0
    %395 = vmatprep.subr.mxu0 0.0
    %396 = vmatpush1.msra.mxu0 0.0
    %397 = vmatprep.subr.mxu0 0.0
    %398 = vmatpush1.msra.mxu0 0.0
    %399 = vmatprep.subr.mxu0 0.0
    %400 = vmatpush1.msra.mxu0 0.0
    %401 = vmatprep.subr.mxu0 0.0
    %402 = vmatpush1.msra.mxu0 0.0
    %403 = vmatprep.subr.mxu0 0.0
    %404 = vmatpush1.msra.mxu0 0.0
    %405 = vmatprep.subr.mxu0 0.0
    %406 = vmatpush1.msra.mxu0 0.0
    %407 = vmatprep.subr.mxu0 0.0
    %408 = vmatpush1.msra.mxu0 0.0
    %409 = vmatprep.subr.mxu0 0.0
    %410 = vmatpush1.msra.mxu0 0.0
    %411 = vmatprep.subr.mxu0 0.0
    %412 = vmatpush1.msra.mxu0 0.0
    %413 = vmatprep.subr.mxu0 0.0
    %414 = vmatpush1.msra.mxu0 0.0
    %415 = vmatprep.subr.mxu0 0.0
    %416 = vmatpush1.msra.mxu0 0.0
    %417 = vmatprep.subr.mxu0 0.0
    %418 = vmatpush1.msra.mxu0 0.0
    %419 = vmatprep.subr.mxu0 0.0
    %420 = vmatpush1.msra.mxu0 0.0
    %421 = vmatprep.subr.mxu0 0.0
    %422 = vmatpush1.msra.mxu0 0.0
    %423 = vmatprep.subr.mxu0 0.0
    %424 = vmatpush1.msra.mxu0 0.0
    %425 = vmatprep.subr.mxu0 0.0
    %426 = vmatpush1.msra.mxu0 0.0
    %427 = vmatprep.subr.mxu0 0.0
    %428 = vmatpush1.msra.mxu0 0.0
    %429 = vmatprep.subr.mxu0 0.0
    %430 = vmatpush1.msra.mxu0 0.0
    %431 = vmatprep.mubr.f32.mxu0 0.0
    %v432 = vand.u32 %v50, 4294901760
    %433 = vmatmul.mubr.f32.gmra.mrb[0].mxu0 %v432
    %v434 = vpop.f32.mrb[0].mxu0
    %v435 = vadd.f32 %v358, %v434
    %v436 = vpop.f32.mrb[0].mxu0
    %437 = vdwg.mxu0
    %438 = vmatprep.subr.mxu0 0.0
    %v439 = vand.u32 %v45, 4294901760
    %440 = vmatpush1.msra.mxu0 %v439
    %441 = vmatprep.subr.mxu0 0.0
    %v442 = vand.u32 %v46, 4294901760
    %443 = vmatpush1.msra.mxu0 %v442
    %444 = vmatprep.subr.mxu0 0.0
    %445 = vmatpush1.msra.mxu0 0.0
    %446 = vmatprep.subr.mxu0 0.0
    %447 = vmatpush1.msra.mxu0 0.0
    %448 = vmatprep.subr.mxu0 0.0
    %449 = vmatpush1.msra.mxu0 0.0
    %450 = vmatprep.subr.mxu0 0.0
    %451 = vmatpush1.msra.mxu0 0.0
    %452 = vmatprep.subr.mxu0 0.0
    %453 = vmatpush1.msra.mxu0 0.0
    %454 = vmatprep.subr.mxu0 0.0
    %455 = vmatpush1.msra.mxu0 0.0
    %456 = vmatprep.subr.mxu0 0.0
    %457 = vmatpush1.msra.mxu0 0.0
    %458 = vmatprep.subr.mxu0 0.0
    %459 = vmatpush1.msra.mxu0 0.0
    %460 = vmatprep.subr.mxu0 0.0
    %461 = vmatpush1.msra.mxu0 0.0
    %462 = vmatprep.subr.mxu0 0.0
    %463 = vmatpush1.msra.mxu0 0.0
    %464 = vmatprep.subr.mxu0 0.0
    %465 = vmatpush1.msra.mxu0 0.0
    %466 = vmatprep.subr.mxu0 0.0
    %467 = vmatpush1.msra.mxu0 0.0
    %468 = vmatprep.subr.mxu0 0.0
    %469 = vmatpush1.msra.mxu0 0.0
    %470 = vmatprep.subr.mxu0 0.0
    %471 = vmatpush1.msra.mxu0 0.0
    %472 = vmatprep.subr.mxu0 0.0
    %473 = vmatpush1.msra.mxu0 0.0
    %474 = vmatprep.subr.mxu0 0.0
    %475 = vmatpush1.msra.mxu0 0.0
    %476 = vmatprep.subr.mxu0 0.0
    %477 = vmatpush1.msra.mxu0 0.0
    %478 = vmatprep.subr.mxu0 0.0
    %479 = vmatpush1.msra.mxu0 0.0
    %480 = vmatprep.subr.mxu0 0.0
    %481 = vmatpush1.msra.mxu0 0.0
    %482 = vmatprep.subr.mxu0 0.0
    %483 = vmatpush1.msra.mxu0 0.0
    %484 = vmatprep.subr.mxu0 0.0
    %485 = vmatpush1.msra.mxu0 0.0
    %486 = vmatprep.subr.mxu0 0.0
    %487 = vmatpush1.msra.mxu0 0.0
    %488 = vmatprep.subr.mxu0 0.0
    %489 = vmatpush1.msra.mxu0 0.0
    %490 = vmatprep.subr.mxu0 0.0
    %491 = vmatpush1.msra.mxu0 0.0
    %492 = vmatprep.subr.mxu0 0.0
    %493 = vmatpush1.msra.mxu0 0.0
    %494 = vmatprep.subr.mxu0 0.0
    %495 = vmatpush1.msra.mxu0 0.0
    %496 = vmatprep.subr.mxu0 0.0
    %497 = vmatpush1.msra.mxu0 0.0
    %498 = vmatprep.subr.mxu0 0.0
    %499 = vmatpush1.msra.mxu0 0.0
    %500 = vmatprep.subr.mxu0 0.0
    %501 = vmatpush1.msra.mxu0 0.0
    %502 = vmatprep.subr.mxu0 0.0
    %503 = vmatpush1.msra.mxu0 0.0
    %504 = vmatprep.mubr.f32.mxu0 0.0
    %v505 = vand.u32 %v50, 4294901760
    %506 = vmatmul.mubr.f32.gmra.mrb[0].mxu0 %v505
    %v507 = vpop.f32.mrb[0].mxu0
    %v508 = vadd.f32 %v435, %v507
    %v509 = vpop.f32.mrb[0].mxu0
    %510 = vdwg.mxu0
    %v511 = vld [vmem:[%s3] sm:$0x1]
    %v512 = vadd.f32 %v508, %v511
    %vm513 = vcmask 253952
    %514 = vst.msk [vmem:[#allocation7] sm:$0x1] %vm513, %v512
    // Predicated region
    $region26: #{tpu_custom_call.1} parent=1 // pred_check
      _
    $region27: #{tpu_custom_call.1} parent=1 // pred_check_branch
      %516 = sbr.rel (0) target = $region29
    $region28: #{tpu_custom_call.1} parent=1 // pred_region
      %s518 = ssub.s32 16, 16
      %519 = vsyncadd [#allocation4], %s518
      %s521 = sshll.u32 [#allocation7], 4
      %s522 = int_to_ptr.vmem [resolvable:$true] %s521
      %524 = dma.vmem_to_hbm [thread:$0]  %s522, 16, %s4, [#allocation4]
    $region29: #{tpu_custom_call.1} parent=1 // pred_fallthru
      _
    // Predicated region
    $region30: #{tpu_custom_call.1} parent=1 // pred_check
      _
    $region31: #{tpu_custom_call.1} parent=1 // pred_check_branch
      %526 = sbr.rel (0) target = $region33
    $region32: #{tpu_custom_call.1} parent=1 // pred_region
      %527 = dma.done [#allocation4], 16
    $region33: #{tpu_custom_call.1} parent=1 // pred_fallthru
      _
    %528 = vsyncpa [#allocation3], 1
    %529 = vsyncpa [#allocation6], 1
    %530 = vsyncpa [#allocation4], 1

</llo_original>
